<compile_context>
chip_gen: v7x
topology: tpu7x:2x2x1
jax: 0.10.0
libtpu: 0.0.40
codegen_flags: <defaults>
</compile_context>

<pallas_src>
import math

import jax
import jax.numpy as jnp
from jax import lax
from jax.experimental import pallas as pl
from jax.experimental.pallas import tpu as pltpu

_NEG_BIG = -1e30  # finite "-inf": avoids (-inf)-(-inf)=NaN and bf16 inf surprises


def _qkv_proj_kernel(x_ref, w_ref, qkv_ref):
    """Row-tiled fused QKV projection: one MXU matmul, one lane-dense output slab.

    w_ref = [Wq^T * (1/sqrt(d_out)) | Wk^T | Wv^T], so Q comes out pre-scaled.
    """
    qkv_ref[...] = jnp.dot(
        x_ref[...], w_ref[...], preferred_element_type=jnp.float32
    ).astype(qkv_ref.dtype)


def _attn_resident_kernel(q_ref, k_ref, v_ref, bias_ref, o_ref):
    """Attention with K/V fully resident in VMEM (fetched from HBM exactly once)."""
    # Contract on the shared last dim: no k.T materialization / XLU transpose.
    s = lax.dot_general(q_ref[...], k_ref[...], (((1,), (1,)), ((), ())),
                        preferred_element_type=jnp.float32)        # [TQ, Skv]
    s = s + bias_ref[...]                                           # mask padded keys
    m = s.max(axis=-1, keepdims=True)
    p = jnp.exp(s - m)
    l = p.sum(axis=-1, keepdims=True)
    o = jnp.dot(p.astype(v_ref.dtype), v_ref[...],
                preferred_element_type=jnp.float32)
    # Reciprocal only on the [TQ, 1] denominator column.
    o_ref[...] = (o * pl.reciprocal(l, approx=False)).astype(o_ref.dtype)


def _attn_flash_kernel(q_ref, k_ref, v_ref, bias_ref, o_ref, m_sc, l_sc):
    """Flash-attention forward (online softmax); accumulates directly into o_ref (f32)."""
    kv = pl.program_id(1)

    @pl.when(kv == 0)
    def _init():
        m_sc[...] = jnp.full_like(m_sc, _NEG_BIG)
        l_sc[...] = jnp.zeros_like(l_sc)
        o_ref[...] = jnp.zeros_like(o_ref)

    s = lax.dot_general(q_ref[...], k_ref[...], (((1,), (1,)), ((), ())),
                        preferred_element_type=jnp.float32)        # [TQ, TKV]
    s = s + bias_ref[...]                                           # mask padded keys

    m_prev = m_sc[...]
    m_new = jnp.maximum(m_prev, s.max(axis=-1, keepdims=True))
    alpha = jnp.exp(m_prev - m_new)
    p = jnp.exp(s - m_new)
    l_sc[...] = alpha * l_sc[...] + p.sum(axis=-1, keepdims=True)
    o_ref[...] = alpha * o_ref[...] + jnp.dot(
        p.astype(v_ref.dtype), v_ref[...], preferred_element_type=jnp.float32)
    m_sc[...] = m_new

    @pl.when(kv == pl.num_programs(1) - 1)
    def _finalize():
        o_ref[...] = o_ref[...] * pl.reciprocal(l_sc[...], approx=False)


def self_attention_v2(x, w_query, w_key, w_value, *, tq=256, tkv=512,
                      compute_dtype=None, resident_kv_bytes_limit=12 << 20):
    """x: [S, d_in]; w_*: [d_out, d_in] (PyTorch nn.Linear weight layout).

    compute_dtype: dtype of MXU operands (f32 default for exactness; bf16 for v6e/v7x
    peak throughput and halved Q/K/V HBM traffic). Accumulation is always f32.
    """
    S, d_in = x.shape
    d_out = w_query.shape[0]
    scale = 1.0 / math.sqrt(d_out)
    cdt = jnp.dtype(compute_dtype) if compute_dtype is not None else jnp.dtype(jnp.float32)
    f32 = jnp.float32

    # Pad to lane/sublane-friendly 128-multiples (lane-dense stores, MXU-shaped tiles).
    Sp = pl.cdiv(S, 128) * 128
    Din_p = pl.cdiv(d_in, 128) * 128
    Dout_p = pl.cdiv(d_out, 128) * 128

    # Tile sizes must divide the padded extents; fall back to 128 otherwise.
    tq = tq if Sp % tq == 0 else 128
    tkv = tkv if Sp % tkv == 0 else 128
    t1 = 256 if Sp % 256 == 0 else 128   # phase-1 row tile

    xp = jnp.pad(x.astype(f32), ((0, Sp - S), (0, Din_p - d_in))).astype(cdt)

    def _pad_w(w):  # [d_out, d_in] -> padded [Din_p, Dout_p] of w.T
        return jnp.pad(w.T.astype(f32), ((0, Din_p - d_in), (0, Dout_p - d_out)))

    # Concatenated weight slab [Din_p, 3*Dout_p] = [Wq^T*scale | Wk^T | Wv^T].
    w_slab = jnp.concatenate(
        [_pad_w(w_query) * scale, _pad_w(w_key), _pad_w(w_value)], axis=1).astype(cdt)

    # Additive key-padding bias: 0 for real keys, -1e30 for padded ones.
    kbias = jnp.where(jnp.arange(Sp) < S, 0.0, _NEG_BIG).astype(f32).reshape(1, Sp)

    # --- Phase 1: fused QKV projection -> single [Sp, 3*Dout_p] slab -----------------
    qkv = pl.pallas_call(
        _qkv_proj_kernel,
        out_shape=jax.ShapeDtypeStruct((Sp, 3 * Dout_p), cdt),
        grid_spec=pltpu.PrefetchScalarGridSpec(
            num_scalar_prefetch=0,
            grid=(Sp // t1,),
            in_specs=[
                pl.BlockSpec((t1, Din_p), lambda i: (i, 0)),
                pl.BlockSpec((Din_p, 3 * Dout_p), lambda i: (0, 0)),
            ],
            out_specs=pl.BlockSpec((t1, 3 * Dout_p), lambda i: (i, 0)),
        ),
        compiler_params=pltpu.CompilerParams(dimension_semantics=("parallel",)),
    )(xp, w_slab)

    cbytes = cdt.itemsize
    resident_bytes = 2 * Sp * Dout_p * cbytes   # K + V kept resident in VMEM
    nq = pl.cdiv(S, tq)                         # skip fully-padded q tiles

    if resident_bytes <= resident_kv_bytes_limit:
        # --- Phase 2a: K/V resident (fetched once for the whole grid) ----------------
        out = pl.pallas_call(
            _attn_resident_kernel,
            out_shape=jax.ShapeDtypeStruct((Sp, Dout_p), f32),
            grid_spec=pltpu.PrefetchScalarGridSpec(
                num_scalar_prefetch=0,
                grid=(nq,),
                in_specs=[
                    pl.BlockSpec((tq, Dout_p), lambda i: (i, 0)),   # Q tile (pre-scaled)
                    pl.BlockSpec((Sp, Dout_p), lambda i: (0, 1)),   # K, resident
                    pl.BlockSpec((Sp, Dout_p), lambda i: (0, 2)),   # V, resident
                    pl.BlockSpec((1, Sp), lambda i: (0, 0)),        # key-padding bias
                ],
                out_specs=pl.BlockSpec((tq, Dout_p), lambda i: (i, 0)),
            ),
            compiler_params=pltpu.CompilerParams(dimension_semantics=("parallel",)),
        )(qkv, qkv, qkv, kbias)
    else:
        # --- Phase 2b: flash streaming over kv tiles ----------------------------------
        nkv = pl.cdiv(S, tkv)                   # fully-padded kv tiles never execute
        blk_bytes = (2 * tq * Dout_p * cbytes        # Q double-buffer
                     + 4 * tkv * Dout_p * cbytes     # K/V double-buffers
                     + tq * Dout_p * 4               # resident f32 out block
                     + 2 * tq * tkv * 4              # score / p intermediates
                     + 4 * tkv * 4)                  # bias
        vmem_limit = min(48 << 20, max(16 << 20, 2 * blk_bytes))
        out = pl.pallas_call(
            _attn_flash_kernel,
            out_shape=jax.ShapeDtypeStruct((Sp, Dout_p), f32),
            grid_spec=pltpu.PrefetchScalarGridSpec(
                num_scalar_prefetch=0,
                grid=(nq, nkv),
                in_specs=[
                    pl.BlockSpec((tq, Dout_p), lambda qi, ki: (qi, 0)),
                    pl.BlockSpec((tkv, Dout_p), lambda qi, ki: (ki, 1)),
                    pl.BlockSpec((tkv, Dout_p), lambda qi, ki: (ki, 2)),
                    pl.BlockSpec((1, tkv), lambda qi, ki: (0, ki)),
                ],
                out_specs=pl.BlockSpec((tq, Dout_p), lambda qi, ki: (qi, 0)),
                scratch_shapes=[
                    pltpu.VMEM((tq, 1), f32),    # running max m
                    pltpu.VMEM((tq, 1), f32),    # running denom l
                ],
            ),
            compiler_params=pltpu.CompilerParams(
                dimension_semantics=("parallel", "arbitrary"),
                vmem_limit_bytes=vmem_limit),
        )(qkv, qkv, qkv, kbias)

    return out[:S, :d_out].astype(x.dtype)


def _reference(x, w_query, w_key, w_value):
    q = x @ w_query.T
    k = x @ w_key.T
    v = x @ w_value.T
    scores = q @ k.T
    w = jax.nn.softmax(scores / jnp.sqrt(jnp.float32(k.shape[-1])), axis=-1)
    return w @ v


if __name__ == "__main__":
    # Exact inputs from the spec: seq=6, d_in=3, d_out=2.
    inputs = jnp.array([[0.43, 0.15, 0.89],
                        [0.55, 0.87, 0.66],
                        [0.57, 0.85, 0.64],
                        [0.22, 0.58, 0.33],
                        [0.77, 0.25, 0.10],
                        [0.05, 0.80, 0.55]], dtype=jnp.float32)
    seq, d_in = inputs.shape
    d_out = 2

    # nn.Linear(d_in, d_out, bias=False) weights: shape [d_out, d_in],
    # deterministic uniform init in (-1/sqrt(d_in), 1/sqrt(d_in)).
    kq, kk, kv = jax.random.split(jax.random.PRNGKey(0), 3)
    bound = 1.0 / math.sqrt(d_in)
    w_query = jax.random.uniform(kq, (d_out, d_in), minval=-bound, maxval=bound, dtype=jnp.float32)
    w_key   = jax.random.uniform(kk, (d_out, d_in), minval=-bound, maxval=bound, dtype=jnp.float32)
    w_value = jax.random.uniform(kv, (d_out, d_in), minval=-bound, maxval=bound, dtype=jnp.float32)

    ref = _reference(inputs, w_query, w_key, w_value)

    # f32 path, resident-K/V kernel (exact to 1e-5).
    out = jax.block_until_ready(self_attention_v2(inputs, w_query, w_key, w_value))
    assert out.shape == (seq, d_out), out.shape
    assert jnp.allclose(out, ref, atol=1e-5, rtol=1e-5), "mismatch vs reference (resident)"

    # f32 path, forced flash-streaming kernel (exercise the large-S code path).
    out_flash = jax.block_until_ready(
        self_attention_v2(inputs, w_query, w_key, w_value, resident_kv_bytes_limit=0))
    assert jnp.allclose(out_flash, ref, atol=1e-5, rtol=1e-5), "mismatch vs reference (flash)"

    # bf16 MXU path (v6e/v7x fast path): loose tolerance, accumulation stays f32.
    out_bf16 = jax.block_until_ready(
        self_attention_v2(inputs, w_query, w_key, w_value, compute_dtype=jnp.bfloat16))
    assert jnp.allclose(out_bf16, ref, atol=5e-2, rtol=5e-2), "mismatch vs reference (bf16)"

    print("KERNEL_OK")
</pallas_src>

<mosaic_0001>
module attributes {stable_mosaic.version = 11 : i64} {
  func.func @_qkv_proj_kernel(%arg0: i32, %arg1: memref<128x128xf32, #tpu.memory_space<vmem>>, %arg2: memref<128x384xf32, #tpu.memory_space<vmem>>, %arg3: memref<128x384xf32, #tpu.memory_space<vmem>>) attributes {dimension_semantics = [#tpu.dimension_semantics<parallel>], iteration_bounds = array<i64: 1>, scalar_prefetch = 0 : i64, scratch_operands = 0 : i64, tpu.core_type = #tpu.core_type<tc>, window_params = [{transform_indices = @transform_0, window_bounds = array<i64: 128, 128>}, {pipeline_mode = #tpu.pipeline_mode<synchronous>, transform_indices = @transform_1, window_bounds = array<i64: 128, 384>}, {transform_indices = @transform_2, window_bounds = array<i64: 128, 384>}]} {
    %c0 = arith.constant 0 : index
    %c0_0 = arith.constant 0 : index
    %0 = vector.load %arg1[%c0, %c0_0] : memref<128x128xf32, #tpu.memory_space<vmem>>, vector<128x128xf32>
    %c0_1 = arith.constant 0 : index
    %c0_2 = arith.constant 0 : index
    %1 = vector.load %arg2[%c0_1, %c0_2] : memref<128x384xf32, #tpu.memory_space<vmem>>, vector<128x384xf32>
    %cst = arith.constant dense<0.000000e+00> : vector<128x384xf32>
    %2 = tpu.matmul %0, %1, %cst {dimension_numbers = #tpu.dot_dimension_numbers<[1], [0], [0], [1], [0, 0, 1, 1], [], []>} : vector<128x128xf32>, vector<128x384xf32>, vector<128x384xf32> -> vector<128x384xf32>
    %c0_3 = arith.constant 0 : index
    %c0_4 = arith.constant 0 : index
    %3 = vector.load %arg3[%c0_3, %c0_4] : memref<128x384xf32, #tpu.memory_space<vmem>>, vector<128x384xf32>
    tpu.vector_store %arg3[%c0_3, %c0_4], %2 {strides = array<i32>} : memref<128x384xf32, #tpu.memory_space<vmem>>, vector<128x384xf32>,
    return
  }
  func.func @transform_0(%arg0: i32) -> (i32, i32) {
    %c0_i32 = arith.constant 0 : i32
    %c0_i32_0 = arith.constant 0 : i32
    return %arg0, %c0_i32 : i32, i32
  }
  func.func @transform_1(%arg0: i32) -> (i32, i32) {
    %c0_i32 = arith.constant 0 : i32
    %c0_i32_0 = arith.constant 0 : i32
    %c0_i32_1 = arith.constant 0 : i32
    return %c0_i32, %c0_i32_0 : i32, i32
  }
  func.func @transform_2(%arg0: i32) -> (i32, i32) {
    %c0_i32 = arith.constant 0 : i32
    %c0_i32_0 = arith.constant 0 : i32
    return %arg0, %c0_i32 : i32, i32
  }
}

</mosaic_0001>

<llo_original>
// kernel: tpu_custom_call.1
$region0: #{tpu_custom_call.1}
  #allocation0 [shape = 'u32[]', space=smem, size = 0x4, offset = 0x4, fixed_abs, tag = 'smem constant byte address 0x4 - core index']
  #allocation1 [shape = 'u32[144,128]{1,0:T(1,128)}', space=vmem, size = 0x12000, scoped, tag = 'internal scratch']
  %s0 = inlined_call_operand.hbm [shape: f32[128,128], index: 0, kind: input, shape index: {}]
  %s1 = inlined_call_operand.hbm [shape: f32[128,384], index: 1, kind: input, shape index: {}]
  %s2 = inlined_call_operand.hbm [shape: f32[128,384], index: 2, kind: output, shape index: {}]
  %s3 = sld [smem:[#allocation0]]
  $region26: #{tpu_custom_call.1} parent=0
    _
  %s5 = ssub.s32 1, %s3
  %s6 = scalar_select 0, %s5, %s3
  $region1: #{tpu_custom_call.1} parent=0
    #allocation2 [shape = 'u8[65536]{0}', space=vmem, size = 0x10000, scoped, tag = 'input window, operand 0, single buffered']
    #allocation3 [shape = 's32[1]{0}', space=sflag, size = 0x4, scoped, tag = 'scoped memory for tpu_custom_call.1']
    #allocation4 [shape = 's32[1]{0}', space=sflag, size = 0x4, scoped, tag = 'scoped memory for tpu_custom_call.1']
    #allocation5 [shape = 'u8[196608]{0}', space=vmem, size = 0x30000, scoped, tag = 'input window, operand 1, single buffered']
    #allocation6 [shape = 's32[1]{0}', space=sflag, size = 0x4, scoped, tag = 'scoped memory for tpu_custom_call.1']
    #allocation7 [shape = 'u8[196608]{0}', space=vmem, size = 0x30000, scoped, tag = 'output window, operand 0, single buffered']
    %7 = vsyncpa [#allocation3], 0
    %8 = vsyncpa [#allocation6], 0
    %9 = vsyncpa [#allocation4], 0
    // Predicated region
    $region2: #{tpu_custom_call.1} parent=1 // pred_check
      _
    $region3: #{tpu_custom_call.1} parent=1 // pred_check_branch
      %11 = sbr.rel (0) target = $region5
    $region4: #{tpu_custom_call.1} parent=1 // pred_region
      %s13 = ssub.s32 2048, 2048
      %14 = vsyncadd [#allocation3], %s13
      %s15 = sshll.u32 [#allocation2], 4
      %s16 = int_to_ptr.vmem [resolvable:$true] %s15
      %21 = dma.hbm_to_vmem [thread:$0]  %s0, 2048, %s16, [#allocation3], 128, 128, 8
    $region5: #{tpu_custom_call.1} parent=1 // pred_fallthru
      _
    // Predicated region
    $region6: #{tpu_custom_call.1} parent=1 // pred_check
      _
    $region7: #{tpu_custom_call.1} parent=1 // pred_check_branch
      %23 = sbr.rel (0) target = $region9
    $region8: #{tpu_custom_call.1} parent=1 // pred_region
      %s25 = ssub.s32 6144, 6144
      %26 = vsyncadd [#allocation6], %s25
      %s27 = sshll.u32 [#allocation5], 4
      %s28 = int_to_ptr.vmem [resolvable:$true] %s27
      %33 = dma.hbm_to_vmem [thread:$0]  %s1, 6144, %s28, [#allocation6], 384, 384, 24
    $region9: #{tpu_custom_call.1} parent=1 // pred_fallthru
      _
    // Predicated region
    $region10: #{tpu_custom_call.1} parent=1 // pred_check
      _
    $region11: #{tpu_custom_call.1} parent=1 // pred_check_branch
      %35 = sbr.rel (0) target = $region13
    $region12: #{tpu_custom_call.1} parent=1 // pred_region
      %36 = dma.done [#allocation3], 2048
    $region13: #{tpu_custom_call.1} parent=1 // pred_fallthru
      _
    // Predicated region
    $region14: #{tpu_custom_call.1} parent=1 // pred_check
      _
    $region15: #{tpu_custom_call.1} parent=1 // pred_check_branch
      %38 = sbr.rel (0) target = $region17
    $region16: #{tpu_custom_call.1} parent=1 // pred_region
      %39 = dma.done [#allocation6], 6144
    $region17: #{tpu_custom_call.1} parent=1 // pred_fallthru
      _
    %v40 = vld [vmem:[#allocation2] sm:$0xff]
    %v41 = vld [vmem:[#allocation2 + $0x8] sm:$0xff]
    %v42 = vld [vmem:[#allocation2 + $0x10] sm:$0xff]
    %v43 = vld [vmem:[#allocation2 + $0x18] sm:$0xff]
    %v44 = vld [vmem:[#allocation2 + $0x20] sm:$0xff]
    %v45 = vld [vmem:[#allocation2 + $0x28] sm:$0xff]
    %v46 = vld [vmem:[#allocation2 + $0x30] sm:$0xff]
    %v47 = vld [vmem:[#allocation2 + $0x38] sm:$0xff]
    %v48 = vld [vmem:[#allocation2 + $0x40] sm:$0xff]
    %v49 = vld [vmem:[#allocation2 + $0x48] sm:$0xff]
    %v50 = vld [vmem:[#allocation2 + $0x50] sm:$0xff]
    %v51 = vld [vmem:[#allocation2 + $0x58] sm:$0xff]
    %v52 = vld [vmem:[#allocation2 + $0x60] sm:$0xff]
    %v53 = vld [vmem:[#allocation2 + $0x68] sm:$0xff]
    %v54 = vld [vmem:[#allocation2 + $0x70] sm:$0xff]
    %v55 = vld [vmem:[#allocation2 + $0x78] sm:$0xff]
    %v56 = vld [vmem:[#allocation5] sm:$0xff]
    %v57 = vld [vmem:[#allocation5 + $0x8] sm:$0xff]
    %v58 = vld [vmem:[#allocation5 + $0x10] sm:$0xff]
    %v59 = vld [vmem:[#allocation5 + $0x18] sm:$0xff]
    %v60 = vld [vmem:[#allocation5 + $0x20] sm:$0xff]
    %v61 = vld [vmem:[#allocation5 + $0x28] sm:$0xff]
    %v62 = vld [vmem:[#allocation5 + $0x30] sm:$0xff]
    %v63 = vld [vmem:[#allocation5 + $0x38] sm:$0xff]
    %v64 = vld [vmem:[#allocation5 + $0x40] sm:$0xff]
    %v65 = vld [vmem:[#allocation5 + $0x48] sm:$0xff]
    %v66 = vld [vmem:[#allocation5 + $0x50] sm:$0xff]
    %v67 = vld [vmem:[#allocation5 + $0x58] sm:$0xff]
    %v68 = vld [vmem:[#allocation5 + $0x60] sm:$0xff]
    %v69 = vld [vmem:[#allocation5 + $0x68] sm:$0xff]
    %v70 = vld [vmem:[#allocation5 + $0x70] sm:$0xff]
    %v71 = vld [vmem:[#allocation5 + $0x78] sm:$0xff]
    %v72 = vld [vmem:[#allocation5 + $0x80] sm:$0xff]
    %v73 = vld [vmem:[#allocation5 + $0x88] sm:$0xff]
    %v74 = vld [vmem:[#allocation5 + $0x90] sm:$0xff]
    %v75 = vld [vmem:[#allocation5 + $0x98] sm:$0xff]
    %v76 = vld [vmem:[#allocation5 + $0xa0] sm:$0xff]
    %v77 = vld [vmem:[#allocation5 + $0xa8] sm:$0xff]
    %v78 = vld [vmem:[#allocation5 + $0xb0] sm:$0xff]
    %v79 = vld [vmem:[#allocation5 + $0xb8] sm:$0xff]
    %v80 = vld [vmem:[#allocation5 + $0xc0] sm:$0xff]
    %v81 = vld [vmem:[#allocation5 + $0xc8] sm:$0xff]
    %v82 = vld [vmem:[#allocation5 + $0xd0] sm:$0xff]
    %v83 = vld [vmem:[#allocation5 + $0xd8] sm:$0xff]
    %v84 = vld [vmem:[#allocation5 + $0xe0] sm:$0xff]
    %v85 = vld [vmem:[#allocation5 + $0xe8] sm:$0xff]
    %v86 = vld [vmem:[#allocation5 + $0xf0] sm:$0xff]
    %v87 = vld [vmem:[#allocation5 + $0xf8] sm:$0xff]
    %v88 = vld [vmem:[#allocation5 + $0x100] sm:$0xff]
    %v89 = vld [vmem:[#allocation5 + $0x108] sm:$0xff]
    %v90 = vld [vmem:[#allocation5 + $0x110] sm:$0xff]
    %v91 = vld [vmem:[#allocation5 + $0x118] sm:$0xff]
    %v92 = vld [vmem:[#allocation5 + $0x120] sm:$0xff]
    %v93 = vld [vmem:[#allocation5 + $0x128] sm:$0xff]
    %v94 = vld [vmem:[#allocation5 + $0x130] sm:$0xff]
    %v95 = vld [vmem:[#allocation5 + $0x138] sm:$0xff]
    %v96 = vld [vmem:[#allocation5 + $0x140] sm:$0xff]
    %v97 = vld [vmem:[#allocation5 + $0x148] sm:$0xff]
    %v98 = vld [vmem:[#allocation5 + $0x150] sm:$0xff]
    %v99 = vld [vmem:[#allocation5 + $0x158] sm:$0xff]
    %v100 = vld [vmem:[#allocation5 + $0x160] sm:$0xff]
    %v101 = vld [vmem:[#allocation5 + $0x168] sm:$0xff]
    %v102 = vld [vmem:[#allocation5 + $0x170] sm:$0xff]
    %v103 = vld [vmem:[#allocation5 + $0x178] sm:$0xff]
    %104 = vmatprep.subr.mxu0 %v57
    %105 = vmatpush1.msra.mxu0 %v56
    %106 = vmatprep.subr.mxu0 %v60
    %107 = vmatpush1.msra.mxu0 %v59
    %108 = vmatprep.subr.mxu0 %v63
    %109 = vmatpush1.msra.mxu0 %v62
    %110 = vmatprep.subr.mxu0 %v66
    %111 = vmatpush1.msra.mxu0 %v65
    %112 = vmatprep.subr.mxu0 %v69
    %113 = vmatpush1.msra.mxu0 %v68
    %114 = vmatprep.subr.mxu0 %v72
    %115 = vmatpush1.msra.mxu0 %v71
    %116 = vmatprep.subr.mxu0 %v75
    %117 = vmatpush1.msra.mxu0 %v74
    %118 = vmatprep.subr.mxu0 %v78
    %119 = vmatpush1.msra.mxu0 %v77
    %120 = vmatprep.subr.mxu0 %v81
    %121 = vmatpush1.msra.mxu0 %v80
    %122 = vmatprep.subr.mxu0 %v84
    %123 = vmatpush1.msra.mxu0 %v83
    %124 = vmatprep.subr.mxu0 %v87
    %125 = vmatpush1.msra.mxu0 %v86
    %126 = vmatprep.subr.mxu0 %v90
    %127 = vmatpush1.msra.mxu0 %v89
    %128 = vmatprep.subr.mxu0 %v93
    %129 = vmatpush1.msra.mxu0 %v92
    %130 = vmatprep.subr.mxu0 %v96
    %131 = vmatpush1.msra.mxu0 %v95
    %132 = vmatprep.subr.mxu0 %v99
    %133 = vmatpush1.msra.mxu0 %v98
    %134 = vmatprep.subr.mxu0 %v102
    %135 = vmatpush1.msra.mxu0 %v101
    %136 = vmatprep.subr.mxu0 0.0
    %137 = vmatpush1.msra.mxu0 0.0
    %138 = vmatprep.subr.mxu0 0.0
    %139 = vmatpush1.msra.mxu0 0.0
    %140 = vmatprep.subr.mxu0 0.0
    %141 = vmatpush1.msra.mxu0 0.0
    %142 = vmatprep.subr.mxu0 0.0
    %143 = vmatpush1.msra.mxu0 0.0
    %144 = vmatprep.subr.mxu0 0.0
    %145 = vmatpush1.msra.mxu0 0.0
    %146 = vmatprep.subr.mxu0 0.0
    %147 = vmatpush1.msra.mxu0 0.0
    %148 = vmatprep.subr.mxu0 0.0
    %149 = vmatpush1.msra.mxu0 0.0
    %150 = vmatprep.subr.mxu0 0.0
    %151 = vmatpush1.msra.mxu0 0.0
    %152 = vmatprep.subr.mxu0 0.0
    %153 = vmatpush1.msra.mxu0 0.0
    %154 = vmatprep.subr.mxu0 0.0
    %155 = vmatpush1.msra.mxu0 0.0
    %156 = vmatprep.subr.mxu0 0.0
    %157 = vmatpush1.msra.mxu0 0.0
    %158 = vmatprep.subr.mxu0 0.0
    %159 = vmatpush1.msra.mxu0 0.0
    %160 = vmatprep.subr.mxu0 0.0
    %161 = vmatpush1.msra.mxu0 0.0
    %162 = vmatprep.subr.mxu0 0.0
    %163 = vmatpush1.msra.mxu0 0.0
    %164 = vmatprep.subr.mxu0 0.0
    %165 = vmatpush1.msra.mxu0 0.0
    %166 = vmatprep.subr.mxu0 0.0
    %167 = vmatpush1.msra.mxu0 0.0
    %168 = vmatprep.mubr.f32.mxu0 0.0
    %169 = vmatmul.mubr.f32.gmra.mrb[0].mxu0 %v40
    %v170 = vpop.f32.mrb[0].mxu0
    %v171 = vadd.f32 0.0, %v170
    %v172 = vpop.f32.mrb[0].mxu0
    %v173 = vadd.f32 0.0, %v172
    %174 = vmatprep.mubr.f32.mxu0 0.0
    %175 = vmatmul.mubr.f32.gmra.mrb[0].mxu0 %v41
    %v176 = vpop.f32.mrb[0].mxu0
    %v177 = vadd.f32 0.0, %v176
    %v178 = vpop.f32.mrb[0].mxu0
    %v179 = vadd.f32 0.0, %v178
    %180 = vmatprep.mubr.f32.mxu0 0.0
    %181 = vmatmul.mubr.f32.gmra.mrb[0].mxu0 %v42
    %v182 = vpop.f32.mrb[0].mxu0
    %v183 = vadd.f32 0.0, %v182
    %v184 = vpop.f32.mrb[0].mxu0
    %v185 = vadd.f32 0.0, %v184
    %186 = vmatprep.mubr.f32.mxu0 0.0
    %187 = vmatmul.mubr.f32.gmra.mrb[0].mxu0 %v43
    %v188 = vpop.f32.mrb[0].mxu0
    %v189 = vadd.f32 0.0, %v188
    %v190 = vpop.f32.mrb[0].mxu0
    %v191 = vadd.f32 0.0, %v190
    %192 = vmatprep.mubr.f32.mxu0 0.0
    %193 = vmatmul.mubr.f32.gmra.mrb[0].mxu0 %v44
    %v194 = vpop.f32.mrb[0].mxu0
    %v195 = vadd.f32 0.0, %v194
    %v196 = vpop.f32.mrb[0].mxu0
    %v197 = vadd.f32 0.0, %v196
    %198 = vmatprep.mubr.f32.mxu0 0.0
    %199 = vmatmul.mubr.f32.gmra.mrb[0].mxu0 %v45
    %v200 = vpop.f32.mrb[0].mxu0
    %v201 = vadd.f32 0.0, %v200
    %v202 = vpop.f32.mrb[0].mxu0
    %v203 = vadd.f32 0.0, %v202
    %204 = vmatprep.mubr.f32.mxu0 0.0
    %205 = vmatmul.mubr.f32.gmra.mrb[0].mxu0 %v46
    %v206 = vpop.f32.mrb[0].mxu0
    %v207 = vadd.f32 0.0, %v206
    %v208 = vpop.f32.mrb[0].mxu0
    %v209 = vadd.f32 0.0, %v208
    %210 = vmatprep.mubr.f32.mxu0 0.0
    %211 = vmatmul.mubr.f32.gmra.mrb[0].mxu0 %v47
    %v212 = vpop.f32.mrb[0].mxu0
    %v213 = vadd.f32 0.0, %v212
    %v214 = vpop.f32.mrb[0].mxu0
    %v215 = vadd.f32 0.0, %v214
    %216 = vmatprep.mubr.f32.mxu0 0.0
    %217 = vmatmul.mubr.f32.gmra.mrb[0].mxu0 %v48
    %v218 = vpop.f32.mrb[0].mxu0
    %v219 = vadd.f32 0.0, %v218
    %v220 = vpop.f32.mrb[0].mxu0
    %v221 = vadd.f32 0.0, %v220
    %222 = vmatprep.mubr.f32.mxu0 0.0
    %223 = vmatmul.mubr.f32.gmra.mrb[0].mxu0 %v49
    %v224 = vpop.f32.mrb[0].mxu0
    %v225 = vadd.f32 0.0, %v224
    %v226 = vpop.f32.mrb[0].mxu0
    %v227 = vadd.f32 0.0, %v226
    %228 = vmatprep.mubr.f32.mxu0 0.0
    %229 = vmatmul.mubr.f32.gmra.mrb[0].mxu0 %v50
    %v230 = vpop.f32.mrb[0].mxu0
    %v231 = vadd.f32 0.0, %v230
    %v232 = vpop.f32.mrb[0].mxu0
    %v233 = vadd.f32 0.0, %v232
    %234 = vmatprep.mubr.f32.mxu0 0.0
    %235 = vmatmul.mubr.f32.gmra.mrb[0].mxu0 %v51
    %v236 = vpop.f32.mrb[0].mxu0
    %v237 = vadd.f32 0.0, %v236
    %v238 = vpop.f32.mrb[0].mxu0
    %v239 = vadd.f32 0.0, %v238
    %240 = vmatprep.mubr.f32.mxu0 0.0
    %241 = vmatmul.mubr.f32.gmra.mrb[0].mxu0 %v52
    %v242 = vpop.f32.mrb[0].mxu0
    %v243 = vadd.f32 0.0, %v242
    %v244 = vpop.f32.mrb[0].mxu0
    %v245 = vadd.f32 0.0, %v244
    %246 = vmatprep.mubr.f32.mxu0 0.0
    %247 = vmatmul.mubr.f32.gmra.mrb[0].mxu0 %v53
    %v248 = vpop.f32.mrb[0].mxu0
    %v249 = vadd.f32 0.0, %v248
    %v250 = vpop.f32.mrb[0].mxu0
    %v251 = vadd.f32 0.0, %v250
    %252 = vmatprep.mubr.f32.mxu0 0.0
    %253 = vmatmul.mubr.f32.gmra.mrb[0].mxu0 %v54
    %v254 = vpop.f32.mrb[0].mxu0
    %v255 = vadd.f32 0.0, %v254
    %v256 = vpop.f32.mrb[0].mxu0
    %v257 = vadd.f32 0.0, %v256
    %258 = vmatprep.mubr.f32.mxu0 0.0
    %259 = vmatmul.mubr.f32.gmra.mrb[0].mxu0 %v55
    %v260 = vpop.f32.mrb[0].mxu0
    %v261 = vadd.f32 0.0, %v260
    %v262 = vpop.f32.mrb[0].mxu0
    %v263 = vadd.f32 0.0, %v262
    %264 = vdwg.mxu0
    %265 = vmatprep.subr.mxu0 0.0
    %266 = vmatpush1.msra.mxu0 %v58
    %267 = vmatprep.subr.mxu0 0.0
    %268 = vmatpush1.msra.mxu0 %v61
    %269 = vmatprep.subr.mxu0 0.0
    %270 = vmatpush1.msra.mxu0 %v64
    %271 = vmatprep.subr.mxu0 0.0
    %272 = vmatpush1.msra.mxu0 %v67
    %273 = vmatprep.subr.mxu0 0.0
    %274 = vmatpush1.msra.mxu0 %v70
    %275 = vmatprep.subr.mxu0 0.0
    %276 = vmatpush1.msra.mxu0 %v73
    %277 = vmatprep.subr.mxu0 0.0
    %278 = vmatpush1.msra.mxu0 %v76
    %279 = vmatprep.subr.mxu0 0.0
    %280 = vmatpush1.msra.mxu0 %v79
    %281 = vmatprep.subr.mxu0 0.0
    %282 = vmatpush1.msra.mxu0 %v82
    %283 = vmatprep.subr.mxu0 0.0
    %284 = vmatpush1.msra.mxu0 %v85
    %285 = vmatprep.subr.mxu0 0.0
    %286 = vmatpush1.msra.mxu0 %v88
    %287 = vmatprep.subr.mxu0 0.0
    %288 = vmatpush1.msra.mxu0 %v91
    %289 = vmatprep.subr.mxu0 0.0
    %290 = vmatpush1.msra.mxu0 %v94
    %291 = vmatprep.subr.mxu0 0.0
    %292 = vmatpush1.msra.mxu0 %v97
    %293 = vmatprep.subr.mxu0 0.0
    %294 = vmatpush1.msra.mxu0 %v100
    %295 = vmatprep.subr.mxu0 0.0
    %296 = vmatpush1.msra.mxu0 %v103
    %297 = vmatprep.subr.mxu0 0.0
    %298 = vmatpush1.msra.mxu0 0.0
    %299 = vmatprep.subr.mxu0 0.0
    %300 = vmatpush1.msra.mxu0 0.0
    %301 = vmatprep.subr.mxu0 0.0
    %302 = vmatpush1.msra.mxu0 0.0
    %303 = vmatprep.subr.mxu0 0.0
    %304 = vmatpush1.msra.mxu0 0.0
    %305 = vmatprep.subr.mxu0 0.0
    %306 = vmatpush1.msra.mxu0 0.0
    %307 = vmatprep.subr.mxu0 0.0
    %308 = vmatpush1.msra.mxu0 0.0
    %309 = vmatprep.subr.mxu0 0.0
    %310 = vmatpush1.msra.mxu0 0.0
    %311 = vmatprep.subr.mxu0 0.0
    %312 = vmatpush1.msra.mxu0 0.0
    %313 = vmatprep.subr.mxu0 0.0
    %314 = vmatpush1.msra.mxu0 0.0
    %315 = vmatprep.subr.mxu0 0.0
    %316 = vmatpush1.msra.mxu0 0.0
    %317 = vmatprep.subr.mxu0 0.0
    %318 = vmatpush1.msra.mxu0 0.0
    %319 = vmatprep.subr.mxu0 0.0
    %320 = vmatpush1.msra.mxu0 0.0
    %321 = vmatprep.subr.mxu0 0.0
    %322 = vmatpush1.msra.mxu0 0.0
    %323 = vmatprep.subr.mxu0 0.0
    %324 = vmatpush1.msra.mxu0 0.0
    %325 = vmatprep.subr.mxu0 0.0
    %326 = vmatpush1.msra.mxu0 0.0
    %327 = vmatprep.subr.mxu0 0.0
    %328 = vmatpush1.msra.mxu0 0.0
    %329 = vmatprep.mubr.f32.mxu0 0.0
    %330 = vmatmul.mubr.f32.gmra.mrb[0].mxu0 %v40
    %v331 = vpop.f32.mrb[0].mxu0
    %v332 = vadd.f32 0.0, %v331
    %v333 = vpop.f32.mrb[0].mxu0
    %334 = vmatprep.mubr.f32.mxu0 0.0
    %335 = vmatmul.mubr.f32.gmra.mrb[0].mxu0 %v41
    %v336 = vpop.f32.mrb[0].mxu0
    %v337 = vadd.f32 0.0, %v336
    %v338 = vpop.f32.mrb[0].mxu0
    %339 = vmatprep.mubr.f32.mxu0 0.0
    %340 = vmatmul.mubr.f32.gmra.mrb[0].mxu0 %v42
    %v341 = vpop.f32.mrb[0].mxu0
    %v342 = vadd.f32 0.0, %v341
    %v343 = vpop.f32.mrb[0].mxu0
    %344 = vmatprep.mubr.f32.mxu0 0.0
    %345 = vmatmul.mubr.f32.gmra.mrb[0].mxu0 %v43
    %v346 = vpop.f32.mrb[0].mxu0
    %v347 = vadd.f32 0.0, %v346
    %v348 = vpop.f32.mrb[0].mxu0
    %349 = vmatprep.mubr.f32.mxu0 0.0
    %350 = vmatmul.mubr.f32.gmra.mrb[0].mxu0 %v44
    %v351 = vpop.f32.mrb[0].mxu0
    %v352 = vadd.f32 0.0, %v351
    %v353 = vpop.f32.mrb[0].mxu0
    %354 = vmatprep.mubr.f32.mxu0 0.0
    %355 = vmatmul.mubr.f32.gmra.mrb[0].mxu0 %v45
    %v356 = vpop.f32.mrb[0].mxu0
    %v357 = vadd.f32 0.0, %v356
    %v358 = vpop.f32.mrb[0].mxu0
    %359 = vmatprep.mubr.f32.mxu0 0.0
    %360 = vmatmul.mubr.f32.gmra.mrb[0].mxu0 %v46
    %v361 = vpop.f32.mrb[0].mxu0
    %v362 = vadd.f32 0.0, %v361
    %v363 = vpop.f32.mrb[0].mxu0
    %364 = vmatprep.mubr.f32.mxu0 0.0
    %365 = vmatmul.mubr.f32.gmra.mrb[0].mxu0 %v47
    %v366 = vpop.f32.mrb[0].mxu0
    %v367 = vadd.f32 0.0, %v366
    %v368 = vpop.f32.mrb[0].mxu0
    %369 = vmatprep.mubr.f32.mxu0 0.0
    %370 = vmatmul.mubr.f32.gmra.mrb[0].mxu0 %v48
    %v371 = vpop.f32.mrb[0].mxu0
    %v372 = vadd.f32 0.0, %v371
    %v373 = vpop.f32.mrb[0].mxu0
    %374 = vmatprep.mubr.f32.mxu0 0.0
    %375 = vmatmul.mubr.f32.gmra.mrb[0].mxu0 %v49
    %v376 = vpop.f32.mrb[0].mxu0
    %v377 = vadd.f32 0.0, %v376
    %v378 = vpop.f32.mrb[0].mxu0
    %379 = vmatprep.mubr.f32.mxu0 0.0
    %380 = vmatmul.mubr.f32.gmra.mrb[0].mxu0 %v50
    %v381 = vpop.f32.mrb[0].mxu0
    %v382 = vadd.f32 0.0, %v381
    %v383 = vpop.f32.mrb[0].mxu0
    %384 = vmatprep.mubr.f32.mxu0 0.0
    %385 = vmatmul.mubr.f32.gmra.mrb[0].mxu0 %v51
    %v386 = vpop.f32.mrb[0].mxu0
    %v387 = vadd.f32 0.0, %v386
    %v388 = vpop.f32.mrb[0].mxu0
    %389 = vmatprep.mubr.f32.mxu0 0.0
    %390 = vmatmul.mubr.f32.gmra.mrb[0].mxu0 %v52
    %v391 = vpop.f32.mrb[0].mxu0
    %v392 = vadd.f32 0.0, %v391
    %v393 = vpop.f32.mrb[0].mxu0
    %394 = vmatprep.mubr.f32.mxu0 0.0
    %395 = vmatmul.mubr.f32.gmra.mrb[0].mxu0 %v53
    %v396 = vpop.f32.mrb[0].mxu0
    %v397 = vadd.f32 0.0, %v396
    %v398 = vpop.f32.mrb[0].mxu0
    %399 = vmatprep.mubr.f32.mxu0 0.0
    %400 = vmatmul.mubr.f32.gmra.mrb[0].mxu0 %v54
    %v401 = vpop.f32.mrb[0].mxu0
    %v402 = vadd.f32 0.0, %v401
    %v403 = vpop.f32.mrb[0].mxu0
    %404 = vmatprep.mubr.f32.mxu0 0.0
    %405 = vmatmul.mubr.f32.gmra.mrb[0].mxu0 %v55
    %v406 = vpop.f32.mrb[0].mxu0
    %v407 = vadd.f32 0.0, %v406
    %v408 = vpop.f32.mrb[0].mxu0
    %409 = vdwg.mxu0
    %410 = vst [vmem:[#allocation7] sm:$0xff] %v171
    %411 = vst [vmem:[#allocation7 + $0x8] sm:$0xff] %v173
    %412 = vst [vmem:[#allocation7 + $0x10] sm:$0xff] %v332
    %413 = vst [vmem:[#allocation7 + $0x18] sm:$0xff] %v177
    %414 = vst [vmem:[#allocation7 + $0x20] sm:$0xff] %v179
    %415 = vst [vmem:[#allocation7 + $0x28] sm:$0xff] %v337
    %416 = vst [vmem:[#allocation7 + $0x30] sm:$0xff] %v183
    %417 = vst [vmem:[#allocation7 + $0x38] sm:$0xff] %v185
    %418 = vst [vmem:[#allocation7 + $0x40] sm:$0xff] %v342
    %419 = vst [vmem:[#allocation7 + $0x48] sm:$0xff] %v189
    %420 = vst [vmem:[#allocation7 + $0x50] sm:$0xff] %v191
    %421 = vst [vmem:[#allocation7 + $0x58] sm:$0xff] %v347
    %422 = vst [vmem:[#allocation7 + $0x60] sm:$0xff] %v195
    %423 = vst [vmem:[#allocation7 + $0x68] sm:$0xff] %v197
    %424 = vst [vmem:[#allocation7 + $0x70] sm:$0xff] %v352
    %425 = vst [vmem:[#allocation7 + $0x78] sm:$0xff] %v201
    %426 = vst [vmem:[#allocation7 + $0x80] sm:$0xff] %v203
    %427 = vst [vmem:[#allocation7 + $0x88] sm:$0xff] %v357
    %428 = vst [vmem:[#allocation7 + $0x90] sm:$0xff] %v207
    %429 = vst [vmem:[#allocation7 + $0x98] sm:$0xff] %v209
    %430 = vst [vmem:[#allocation7 + $0xa0] sm:$0xff] %v362
    %431 = vst [vmem:[#allocation7 + $0xa8] sm:$0xff] %v213
    %432 = vst [vmem:[#allocation7 + $0xb0] sm:$0xff] %v215
    %433 = vst [vmem:[#allocation7 + $0xb8] sm:$0xff] %v367
    %434 = vst [vmem:[#allocation7 + $0xc0] sm:$0xff] %v219
    %435 = vst [vmem:[#allocation7 + $0xc8] sm:$0xff] %v221
    %436 = vst [vmem:[#allocation7 + $0xd0] sm:$0xff] %v372
    %437 = vst [vmem:[#allocation7 + $0xd8] sm:$0xff] %v225
    %438 = vst [vmem:[#allocation7 + $0xe0] sm:$0xff] %v227
    %439 = vst [vmem:[#allocation7 + $0xe8] sm:$0xff] %v377
    %440 = vst [vmem:[#allocation7 + $0xf0] sm:$0xff] %v231
    %441 = vst [vmem:[#allocation7 + $0xf8] sm:$0xff] %v233
    %442 = vst [vmem:[#allocation7 + $0x100] sm:$0xff] %v382
    %443 = vst [vmem:[#allocation7 + $0x108] sm:$0xff] %v237
    %444 = vst [vmem:[#allocation7 + $0x110] sm:$0xff] %v239
    %445 = vst [vmem:[#allocation7 + $0x118] sm:$0xff] %v387
    %446 = vst [vmem:[#allocation7 + $0x120] sm:$0xff] %v243
    %447 = vst [vmem:[#allocation7 + $0x128] sm:$0xff] %v245
    %448 = vst [vmem:[#allocation7 + $0x130] sm:$0xff] %v392
    %449 = vst [vmem:[#allocation7 + $0x138] sm:$0xff] %v249
    %450 = vst [vmem:[#allocation7 + $0x140] sm:$0xff] %v251
    %451 = vst [vmem:[#allocation7 + $0x148] sm:$0xff] %v397
    %452 = vst [vmem:[#allocation7 + $0x150] sm:$0xff] %v255
    %453 = vst [vmem:[#allocation7 + $0x158] sm:$0xff] %v257
    %454 = vst [vmem:[#allocation7 + $0x160] sm:$0xff] %v402
    %455 = vst [vmem:[#allocation7 + $0x168] sm:$0xff] %v261
    %456 = vst [vmem:[#allocation7 + $0x170] sm:$0xff] %v263
    %457 = vst [vmem:[#allocation7 + $0x178] sm:$0xff] %v407
    // Predicated region
    $region18: #{tpu_custom_call.1} parent=1 // pred_check
      _
    $region19: #{tpu_custom_call.1} parent=1 // pred_check_branch
      %459 = sbr.rel (0) target = $region21
    $region20: #{tpu_custom_call.1} parent=1 // pred_region
      %s461 = ssub.s32 6144, 6144
      %462 = vsyncadd [#allocation4], %s461
      %s463 = sshll.u32 [#allocation7], 4
      %s464 = int_to_ptr.vmem [resolvable:$true] %s463
      %469 = dma.vmem_to_hbm [thread:$0]  %s464, 6144, %s2, [#allocation4], 384, 384, 24
    $region21: #{tpu_custom_call.1} parent=1 // pred_fallthru
      _
    // Predicated region
    $region22: #{tpu_custom_call.1} parent=1 // pred_check
      _
    $region23: #{tpu_custom_call.1} parent=1 // pred_check_branch
      %471 = sbr.rel (0) target = $region25
    $region24: #{tpu_custom_call.1} parent=1 // pred_region
      %472 = dma.done [#allocation4], 6144
    $region25: #{tpu_custom_call.1} parent=1 // pred_fallthru
      _
    %473 = vsyncpa [#allocation3], 1
    %474 = vsyncpa [#allocation6], 1
    %475 = vsyncpa [#allocation4], 1

</llo_original>
